<compile_context>
chip_gen: v5e
topology: v5e:2x2
jax: 0.10.0
libtpu: 0.0.40
codegen_flags: <defaults>
</compile_context>

<pallas_src>
import functools

import jax
import jax.numpy as jnp
import numpy as np
from jax import lax
from jax.experimental import pallas as pl
from jax.experimental.pallas import tpu as pltpu


def _triplet_loss_kernel(t_ref, emb_ref, trip_ref, loss_ref, prec_ref,
                         m_ref, loss_acc, prec_acc,
                         *, margin, n, tt, tiles_per_core):
    # t_ref    : (1,)  i32 SMEM scalar-prefetch -> true triplet count T
    # emb_ref  : (N, D) f32 VMEM, constant block (resident across grid steps)
    # trip_ref : (3, Tt) i32 VMEM, one tile of (anchor, positive, negative) cols
    # loss_ref/prec_ref : (1, 1) f32 SMEM output blocks (one row per core)
    # m_ref    : (N, N) f32 VMEM scratch holding M = 2*G - diag (resident)
    # loss_acc/prec_acc : (1, Tt) f32 VMEM vector accumulators
    core = pl.program_id(0)
    step = pl.program_id(1)
    tile_idx = core * tiles_per_core + step

    @pl.when(step == 0)
    def _init():
        emb = emb_ref[...]
        sq = jnp.sum(emb * emb, axis=1, keepdims=True)
        # F.normalize(p=2, dim=1): x / max(||x||, 1e-12) == x * min(rsqrt(||x||^2), 1e12)
        emb_n = emb * jnp.minimum(lax.rsqrt(sq), 1e12)
        # G = emb_n @ emb_n^T (contract the embedding dim of both operands).
        gram = lax.dot_general(emb_n, emb_n, (((1,), (1,)), ((), ())),
                               preferred_element_type=jnp.float32)
        diag = jnp.sum(emb_n * emb_n, axis=1, keepdims=True)          # (N, 1)
        # Fold the per-tile affine into the resident scratch (perf review).
        m_ref[...] = 2.0 * gram - diag                                # (N, N)
        loss_acc[...] = jnp.zeros_like(loss_acc)
        prec_acc[...] = jnp.zeros_like(prec_acc)

    idx = trip_ref[...]                                               # (3, Tt)
    row_iota = lax.broadcasted_iota(jnp.int32, (n, tt), 0)            # (N, Tt)
    oh_a = (row_iota == idx[0:1, :]).astype(jnp.float32)              # anchor one-hot
    # Difference selector (exact {-1, 0, +1}): negative minus positive.
    sel = ((row_iota == idx[2:3, :]).astype(jnp.float32)
           - (row_iota == idx[1:2, :]).astype(jnp.float32))           # (N, Tt)

    # rows[i, j] = M[i, a_j]  (single (N,N)@(N,Tt) MXU matmul per tile)
    rows = jnp.dot(m_ref[...], oh_a, preferred_element_type=jnp.float32)

    # d_j = ap_j - an_j = M[n_j, a_j] - M[p_j, a_j] = sum_i sel[i,j] * rows[i,j]
    # (sublane reduce; could be moved to the MXU via ones((1,N)) @ (sel*rows)
    #  if the XLU ever becomes the bottleneck at medium N).
    d = jnp.sum(sel * rows, axis=0, keepdims=True)                    # (1, Tt)
    loss_col = jnp.maximum(d + margin, 0.0)                           # relu
    prec_col = -d                                                     # an - ap

    t_actual = t_ref[0]
    # Mask only tiles that overlap the padded region (perf review).
    needs_mask = (tile_idx + 1) * tt > t_actual

    @pl.when(jnp.logical_not(needs_mask))
    def _accum_full():
        loss_acc[...] += loss_col
        prec_acc[...] += prec_col

    @pl.when(needs_mask)
    def _accum_masked():
        col = lax.broadcasted_iota(jnp.int32, (1, tt), 1) + tile_idx * tt
        valid = col < t_actual
        loss_acc[...] += jnp.where(valid, loss_col, 0.0)
        prec_acc[...] += jnp.where(valid, prec_col, 0.0)

    @pl.when(step == pl.num_programs(1) - 1)
    def _finalize():
        inv_t = 1.0 / t_actual.astype(jnp.float32)
        # Single cross-lane reduce per core, then scalar SMEM store.
        loss_ref[0, 0] = jnp.sum(loss_acc[...]) * inv_t    # losses.mean() (partial)
        prec_ref[0, 0] = jnp.sum(prec_acc[...]) * inv_t    # sum(an - ap) / T (partial)


def online_triplet_loss(embeddings, triplets, margin, *, block_t=None, num_cores=1):
    """embeddings: (N, D) float; triplets: (T, 3) int -> (loss, prec) f32 scalars.

    num_cores=2 splits the triplet axis across v7x's two TensorCores (leading
    "parallel" grid axis, per-core partial sums added here); keep 1 on v5e/v6e.
    """
    n, emb_d = embeddings.shape
    t = int(triplets.shape[0])
    if t == 0:
        # Guard: PyTorch would produce NaN (mean of empty); return zeros instead.
        z = jnp.float32(0.0)
        return z, z

    if block_t is None:
        # Big tiles amortize the ~0.35us/step grid overhead; clamp for large N
        # so the (N, block_t) f32 one-hot temporaries stay out of the spill regime.
        block_t = 1024 if n <= 256 else (512 if n <= 1024 else 256)

    tiles_per_core = int(pl.cdiv(pl.cdiv(t, block_t), num_cores))
    t_pad = num_cores * tiles_per_core * block_t

    # Host-side lane-dense (3, T_pad) triplet layout with padded columns = index 0
    # (masked in-kernel). Avoids an on-device transpose of a 3-wide array.
    trip_host = np.asarray(jax.device_get(triplets), dtype=np.int32)   # (T, 3)
    trip_pad = np.zeros((3, t_pad), dtype=np.int32)
    trip_pad[:, :t] = trip_host.T

    kernel = functools.partial(
        _triplet_loss_kernel, margin=float(margin), n=n, tt=block_t,
        tiles_per_core=tiles_per_core)

    # Explicit VMEM budget: resident M (N^2*4B) + double-buffered inputs
    # (embeddings + triplet tiles) + accumulators + per-tile (N, block_t) temps.
    est = (n * n * 4                       # resident M
           + 2 * n * emb_d * 4             # double-buffered embeddings block
           + 2 * 8 * block_t * 4           # double-buffered triplet tile (3->8 sublanes)
           + 2 * block_t * 4 * 2           # vector accumulators
           + 6 * n * block_t * 4           # oh_a / sel / rows / products live vregs
           + (2 << 20))                    # slack
    vmem_limit = int(min(max(32 << 20, 2 * est), 120 << 20))
    # TODO(synk): for N >~ 2500 on v7x (64 MiB VMEM) switch to a bf16 or tiled
    # Gram, or fall back to gathering normalized rows via (Tt,N)@(N,D) one-hots.
    # TODO(synk): pl.Buffered(1) on the constant embeddings block would free
    # N*D*4 B of VMEM (skipped here; negligible at these sizes).

    loss, prec = pl.pallas_call(
        kernel,
        out_shape=(
            jax.ShapeDtypeStruct((num_cores, 1), jnp.float32),
            jax.ShapeDtypeStruct((num_cores, 1), jnp.float32),
        ),
        grid_spec=pltpu.PrefetchScalarGridSpec(
            num_scalar_prefetch=1,             # t_actual lives in SMEM
            grid=(num_cores, tiles_per_core),
            in_specs=[
                # Full embeddings stay resident (same block every step).
                pl.BlockSpec((n, emb_d), lambda c, i, t_s: (0, 0)),
                # One tile of triplet columns per step (pipelined), per-core slice.
                pl.BlockSpec((3, block_t),
                             lambda c, i, t_s: (0, c * tiles_per_core + i)),
            ],
            out_specs=(
                pl.BlockSpec((1, 1), lambda c, i, t_s: (c, 0),
                             memory_space=pltpu.MemorySpace.SMEM),
                pl.BlockSpec((1, 1), lambda c, i, t_s: (c, 0),
                             memory_space=pltpu.MemorySpace.SMEM),
            ),
            scratch_shapes=[
                pltpu.VMEM((n, n), jnp.float32),        # resident M = 2G - diag
                pltpu.VMEM((1, block_t), jnp.float32),  # loss vector accumulator
                pltpu.VMEM((1, block_t), jnp.float32),  # prec vector accumulator
            ],
        ),
        compiler_params=pltpu.CompilerParams(
            dimension_semantics=("parallel", "arbitrary"),
            vmem_limit_bytes=vmem_limit,
        ),
    )(jnp.asarray([t], dtype=jnp.int32),
      embeddings.astype(jnp.float32),
      jnp.asarray(trip_pad))

    # Per-core partials (already divided by the global T) sum to the totals.
    return jnp.sum(loss), jnp.sum(prec)


def all_triplet_selector(labels):
    """Deterministic 'all valid triplets' selector (host-side glue).

    Returns (T, 3) int32 array of (anchor, positive, negative) indices with
    labels[a] == labels[p], a != p, labels[n] != labels[a].
    """
    labels = np.asarray(labels)
    trips = []
    n = labels.shape[0]
    for a in range(n):
        for p in range(n):
            if p == a or labels[p] != labels[a]:
                continue
            for neg in range(n):
                if labels[neg] == labels[a]:
                    continue
                trips.append((a, p, neg))
    return np.asarray(trips, dtype=np.int32)


def reference_loss(embeddings, triplets, margin):
    """Pure-JAX reference mirroring the PyTorch forward."""
    norm = jnp.linalg.norm(embeddings, axis=1, keepdims=True)
    emb = embeddings / jnp.maximum(norm, 1e-12)
    a, p, ng = emb[triplets[:, 0]], emb[triplets[:, 1]], emb[triplets[:, 2]]
    ap = jnp.sum((a - p) ** 2, axis=1)
    an = jnp.sum((a - ng) ** 2, axis=1)
    losses = jnp.maximum(ap - an + margin, 0.0)
    prec = jnp.sum(an - ap) / triplets.shape[0]
    return jnp.mean(losses), prec


if __name__ == "__main__":
    key = jax.random.PRNGKey(0)

    batch = 16         # 4 classes x 4 samples
    emb_dim = 32
    margin = 1.0

    embeddings = jax.random.normal(key, (batch, emb_dim), dtype=jnp.float32)
    labels = np.repeat(np.arange(4), 4).astype(np.int32)

    triplets = all_triplet_selector(labels)   # (576, 3) int32, host-side

    # block_t=128 -> 5 grid steps (576 padded to 640): exercises tiling, the
    # VMEM-vector accumulation across steps, the unmasked fast path (tiles 0-3)
    # and the masked tail path (tile 4). num_cores=2 targets v7x.
    loss, prec = online_triplet_loss(embeddings, jnp.asarray(triplets), margin,
                                     block_t=128, num_cores=1)
    jax.block_until_ready((loss, prec))

    ref_loss, ref_prec = reference_loss(embeddings, jnp.asarray(triplets), margin)
    np.testing.assert_allclose(np.asarray(loss), np.asarray(ref_loss),
                               rtol=1e-4, atol=1e-5)
    np.testing.assert_allclose(np.asarray(prec), np.asarray(ref_prec),
                               rtol=1e-4, atol=1e-5)

    print("KERNEL_OK")
</pallas_src>

<mosaic_0001>
module attributes {stable_mosaic.version = 11 : i64} {
  func.func @_triplet_loss_kernel(%arg0: i32, %arg1: i32, %arg2: memref<1xi32, #tpu.memory_space<smem>>, %arg3: memref<16x32xf32, #tpu.memory_space<vmem>>, %arg4: memref<3x128xi32, #tpu.memory_space<vmem>>, %arg5: memref<1x1xf32, #tpu.memory_space<smem>>, %arg6: memref<1x1xf32, #tpu.memory_space<smem>>, %arg7: memref<16x16xf32, #tpu.memory_space<vmem>>, %arg8: memref<1x128xf32, #tpu.memory_space<vmem>>, %arg9: memref<1x128xf32, #tpu.memory_space<vmem>>) attributes {dimension_semantics = [#tpu.dimension_semantics<parallel>, #tpu.dimension_semantics<arbitrary>], iteration_bounds = array<i64: 1, 5>, scalar_prefetch = 1 : i64, scratch_operands = 3 : i64, tpu.core_type = #tpu.core_type<tc>, window_params = [{pipeline_mode = #tpu.pipeline_mode<synchronous>, transform_indices = @transform_0, window_bounds = array<i64: 16, 32>}, {transform_indices = @transform_1, window_bounds = array<i64: 3, 128>}, {transform_indices = @transform_2, window_bounds = array<i64: 1, 1>}, {transform_indices = @transform_3, window_bounds = array<i64: 1, 1>}]} {
    %c5_i32 = arith.constant 5 : i32
    %0 = arith.muli %arg0, %c5_i32 : i32
    %1 = arith.addi %0, %arg1 : i32
    %c0_i32 = arith.constant 0 : i32
    %2 = arith.cmpi eq, %arg1, %c0_i32 : i32
    %3 = arith.extui %2 : i1 to i32
    %c0_i32_0 = arith.constant 0 : i32
    %4 = arith.cmpi ne, %3, %c0_i32_0 : i32
    scf.if %4 {
      %c0_12 = arith.constant 0 : index
      %c0_13 = arith.constant 0 : index
      %46 = vector.load %arg3[%c0_12, %c0_13] : memref<16x32xf32, #tpu.memory_space<vmem>>, vector<16x32xf32>
      %47 = arith.mulf %46, %46 : vector<16x32xf32>
      %cst_14 = arith.constant dense<0.000000e+00> : vector<16xf32>
      %48 = vector.multi_reduction <add>, %47, %cst_14 [1] : vector<16x32xf32> to vector<16xf32>
      %49 = vector.shape_cast %48 : vector<16xf32> to vector<16x1xf32>
      %50 = math.rsqrt %49 : vector<16x1xf32>
      %cst_15 = arith.constant 9.99999995E+11 : f32
      %51 = vector.broadcast %cst_15 : f32 to vector<16x1xf32>
      %52 = arith.minimumf %50, %51 : vector<16x1xf32>
      %53 = vector.broadcast %52 : vector<16x1xf32> to vector<16x32xf32>
      %54 = arith.mulf %46, %53 : vector<16x32xf32>
      %cst_16 = arith.constant dense<0.000000e+00> : vector<16x16xf32>
      %55 = tpu.matmul %54, %54, %cst_16 {dimension_numbers = #tpu.dot_dimension_numbers<[1], [1], [0], [0], [0, 0, 1, 0], [], []>} : vector<16x32xf32>, vector<16x32xf32>, vector<16x16xf32> -> vector<16x16xf32>
      %56 = arith.mulf %54, %54 : vector<16x32xf32>
      %cst_17 = arith.constant dense<0.000000e+00> : vector<16xf32>
      %57 = vector.multi_reduction <add>, %56, %cst_17 [1] : vector<16x32xf32> to vector<16xf32>
      %58 = vector.shape_cast %57 : vector<16xf32> to vector<16x1xf32>
      %cst_18 = arith.constant 2.000000e+00 : f32
      %59 = vector.broadcast %cst_18 : f32 to vector<16x16xf32>
      %60 = arith.mulf %59, %55 : vector<16x16xf32>
      %61 = vector.broadcast %58 : vector<16x1xf32> to vector<16x16xf32>
      %62 = arith.subf %60, %61 : vector<16x16xf32>
      %c0_19 = arith.constant 0 : index
      %c0_20 = arith.constant 0 : index
      %63 = vector.load %arg7[%c0_19, %c0_20] : memref<16x16xf32, #tpu.memory_space<vmem>>, vector<16x16xf32>
      tpu.vector_store %arg7[%c0_19, %c0_20], %62 {strides = array<i32>} : memref<16x16xf32, #tpu.memory_space<vmem>>, vector<16x16xf32>,
      %cst_21 = arith.constant 0.000000e+00 : f32
      %64 = vector.broadcast %cst_21 : f32 to vector<1x128xf32>
      %c0_22 = arith.constant 0 : index
      %c0_23 = arith.constant 0 : index
      %65 = vector.load %arg8[%c0_22, %c0_23] : memref<1x128xf32, #tpu.memory_space<vmem>>, vector<1x128xf32>
      tpu.vector_store %arg8[%c0_22, %c0_23], %64 {strides = array<i32>} : memref<1x128xf32, #tpu.memory_space<vmem>>, vector<1x128xf32>,
      %cst_24 = arith.constant 0.000000e+00 : f32
      %66 = vector.broadcast %cst_24 : f32 to vector<1x128xf32>
      %c0_25 = arith.constant 0 : index
      %c0_26 = arith.constant 0 : index
      %67 = vector.load %arg9[%c0_25, %c0_26] : memref<1x128xf32, #tpu.memory_space<vmem>>, vector<1x128xf32>
      tpu.vector_store %arg9[%c0_25, %c0_26], %66 {strides = array<i32>} : memref<1x128xf32, #tpu.memory_space<vmem>>, vector<1x128xf32>,
    } else {
    }
    %c0 = arith.constant 0 : index
    %c0_1 = arith.constant 0 : index
    %5 = vector.load %arg4[%c0, %c0_1] : memref<3x128xi32, #tpu.memory_space<vmem>>, vector<3x128xi32>
    %6 = tpu.iota {dimensions = array<i32: 0>} : vector<16x128xi32>
    %7 = vector.extract_strided_slice %5 {offsets = [0, 0], sizes = [1, 128], strides = [1, 1]} : vector<3x128xi32> to vector<1x128xi32>
    %8 = vector.broadcast %7 : vector<1x128xi32> to vector<16x128xi32>
    %9 = arith.cmpi eq, %6, %8 : vector<16x128xi32>
    %10 = arith.extui %9 : vector<16x128xi1> to vector<16x128xi32>
    %11 = arith.sitofp %10 : vector<16x128xi32> to vector<16x128xf32>
    %12 = vector.extract_strided_slice %5 {offsets = [2, 0], sizes = [1, 128], strides = [1, 1]} : vector<3x128xi32> to vector<1x128xi32>
    %13 = vector.broadcast %12 : vector<1x128xi32> to vector<16x128xi32>
    %14 = arith.cmpi eq, %6, %13 : vector<16x128xi32>
    %15 = arith.extui %14 : vector<16x128xi1> to vector<16x128xi32>
    %16 = arith.sitofp %15 : vector<16x128xi32> to vector<16x128xf32>
    %17 = vector.extract_strided_slice %5 {offsets = [1, 0], sizes = [1, 128], strides = [1, 1]} : vector<3x128xi32> to vector<1x128xi32>
    %18 = vector.broadcast %17 : vector<1x128xi32> to vector<16x128xi32>
    %19 = arith.cmpi eq, %6, %18 : vector<16x128xi32>
    %20 = arith.extui %19 : vector<16x128xi1> to vector<16x128xi32>
    %21 = arith.sitofp %20 : vector<16x128xi32> to vector<16x128xf32>
    %22 = arith.subf %16, %21 : vector<16x128xf32>
    %c0_2 = arith.constant 0 : index
    %c0_3 = arith.constant 0 : index
    %23 = vector.load %arg7[%c0_2, %c0_3] : memref<16x16xf32, #tpu.memory_space<vmem>>, vector<16x16xf32>
    %cst = arith.constant dense<0.000000e+00> : vector<16x128xf32>
    %24 = tpu.matmul %23, %11, %cst {dimension_numbers = #tpu.dot_dimension_numbers<[1], [0], [0], [1], [0, 0, 1, 1], [], []>} : vector<16x16xf32>, vector<16x128xf32>, vector<16x128xf32> -> vector<16x128xf32>
    %25 = arith.mulf %22, %24 : vector<16x128xf32>
    %cst_4 = arith.constant dense<0.000000e+00> : vector<128xf32>
    %26 = vector.multi_reduction <add>, %25, %cst_4 [0] : vector<16x128xf32> to vector<128xf32>
    %27 = vector.shape_cast %26 : vector<128xf32> to vector<1x128xf32>
    %cst_5 = arith.constant 1.000000e+00 : f32
    %28 = vector.broadcast %cst_5 : f32 to vector<1x128xf32>
    %29 = arith.addf %27, %28 : vector<1x128xf32>
    %cst_6 = arith.constant 0.000000e+00 : f32
    %30 = vector.broadcast %cst_6 : f32 to vector<1x128xf32>
    %31 = arith.maximumf %29, %30 : vector<1x128xf32>
    %cst_7 = arith.constant 0.000000e+00 : f32
    %32 = vector.broadcast %cst_7 : f32 to vector<1x128xf32>
    %33 = arith.subf %32, %27 : vector<1x128xf32>
    %c0_8 = arith.constant 0 : index
    %34 = memref.load %arg2[%c0_8] : memref<1xi32, #tpu.memory_space<smem>>
    %c1_i32 = arith.constant 1 : i32
    %35 = arith.addi %1, %c1_i32 : i32
    %c128_i32 = arith.constant 128 : i32
    %36 = arith.muli %35, %c128_i32 : i32
    %37 = arith.cmpi sgt, %36, %34 : i32
    %true = arith.constant true
    %38 = arith.xori %37, %true : i1
    %39 = arith.extui %38 : i1 to i32
    %c0_i32_9 = arith.constant 0 : i32
    %40 = arith.cmpi ne, %39, %c0_i32_9 : i32
    scf.if %40 {
      %c0_12 = arith.constant 0 : index
      %c0_13 = arith.constant 0 : index
      %46 = vector.load %arg8[%c0_12, %c0_13] : memref<1x128xf32, #tpu.memory_space<vmem>>, vector<1x128xf32>
      %47 = arith.addf %46, %31 : vector<1x128xf32>
      %c0_14 = arith.constant 0 : index
      %c0_15 = arith.constant 0 : index
      %48 = vector.load %arg8[%c0_14, %c0_15] : memref<1x128xf32, #tpu.memory_space<vmem>>, vector<1x128xf32>
      tpu.vector_store %arg8[%c0_14, %c0_15], %47 {strides = array<i32>} : memref<1x128xf32, #tpu.memory_space<vmem>>, vector<1x128xf32>,
      %c0_16 = arith.constant 0 : index
      %c0_17 = arith.constant 0 : index
      %49 = vector.load %arg9[%c0_16, %c0_17] : memref<1x128xf32, #tpu.memory_space<vmem>>, vector<1x128xf32>
      %50 = arith.addf %49, %33 : vector<1x128xf32>
      %c0_18 = arith.constant 0 : index
      %c0_19 = arith.constant 0 : index
      %51 = vector.load %arg9[%c0_18, %c0_19] : memref<1x128xf32, #tpu.memory_space<vmem>>, vector<1x128xf32>
      tpu.vector_store %arg9[%c0_18, %c0_19], %50 {strides = array<i32>} : memref<1x128xf32, #tpu.memory_space<vmem>>, vector<1x128xf32>,
    } else {
    }
    %41 = arith.extui %37 : i1 to i32
    %c0_i32_10 = arith.constant 0 : i32
    %42 = arith.cmpi ne, %41, %c0_i32_10 : i32
    scf.if %42 {
      %46 = tpu.iota {dimensions = array<i32: 1>} : vector<1x128xi32>
      %c128_i32_12 = arith.constant 128 : i32
      %47 = arith.muli %1, %c128_i32_12 : i32
      %48 = vector.broadcast %47 : i32 to vector<1x128xi32>
      %49 = arith.addi %46, %48 : vector<1x128xi32>
      %50 = vector.broadcast %34 : i32 to vector<1x128xi32>
      %51 = arith.cmpi slt, %49, %50 : vector<1x128xi32>
      %c0_13 = arith.constant 0 : index
      %c0_14 = arith.constant 0 : index
      %52 = vector.load %arg8[%c0_13, %c0_14] : memref<1x128xf32, #tpu.memory_space<vmem>>, vector<1x128xf32>
      %cst_15 = arith.constant 0.000000e+00 : f32
      %53 = vector.broadcast %cst_15 : f32 to vector<1x128xf32>
      %54 = arith.select %51, %31, %53 : vector<1x128xi1>, vector<1x128xf32>
      %55 = arith.addf %52, %54 : vector<1x128xf32>
      %c0_16 = arith.constant 0 : index
      %c0_17 = arith.constant 0 : index
      %56 = vector.load %arg8[%c0_16, %c0_17] : memref<1x128xf32, #tpu.memory_space<vmem>>, vector<1x128xf32>
      tpu.vector_store %arg8[%c0_16, %c0_17], %55 {strides = array<i32>} : memref<1x128xf32, #tpu.memory_space<vmem>>, vector<1x128xf32>,
      %c0_18 = arith.constant 0 : index
      %c0_19 = arith.constant 0 : index
      %57 = vector.load %arg9[%c0_18, %c0_19] : memref<1x128xf32, #tpu.memory_space<vmem>>, vector<1x128xf32>
      %cst_20 = arith.constant 0.000000e+00 : f32
      %58 = vector.broadcast %cst_20 : f32 to vector<1x128xf32>
      %59 = arith.select %51, %33, %58 : vector<1x128xi1>, vector<1x128xf32>
      %60 = arith.addf %57, %59 : vector<1x128xf32>
      %c0_21 = arith.constant 0 : index
      %c0_22 = arith.constant 0 : index
      %61 = vector.load %arg9[%c0_21, %c0_22] : memref<1x128xf32, #tpu.memory_space<vmem>>, vector<1x128xf32>
      tpu.vector_store %arg9[%c0_21, %c0_22], %60 {strides = array<i32>} : memref<1x128xf32, #tpu.memory_space<vmem>>, vector<1x128xf32>,
    } else {
    }
    %c4_i32 = arith.constant 4 : i32
    %43 = arith.cmpi eq, %arg1, %c4_i32 : i32
    %44 = arith.extui %43 : i1 to i32
    %c0_i32_11 = arith.constant 0 : i32
    %45 = arith.cmpi ne, %44, %c0_i32_11 : i32
    scf.if %45 {
      %46 = arith.sitofp %34 : i32 to f32
      %cst_12 = arith.constant 1.000000e+00 : f32
      %47 = arith.divf %cst_12, %46 : f32
      %c0_13 = arith.constant 0 : index
      %c0_14 = arith.constant 0 : index
      %48 = vector.load %arg8[%c0_13, %c0_14] : memref<1x128xf32, #tpu.memory_space<vmem>>, vector<1x128xf32>
      %49 = vector.shape_cast %48 : vector<1x128xf32> to vector<1x1x128xf32>
      %cst_15 = arith.constant dense<0.000000e+00> : vector<1xf32>
      %50 = vector.multi_reduction <add>, %49, %cst_15 [1, 2] : vector<1x1x128xf32> to vector<1xf32>
      %51 = vector.shape_cast %50 : vector<1xf32> to vector<1x1x1xf32>
      %52 = vector.extract %51[0, 0, 0] : f32 from vector<1x1x1xf32>
      %53 = arith.mulf %52, %47 : f32
      %c0_16 = arith.constant 0 : index
      %c0_17 = arith.constant 0 : index
      %54 = memref.load %arg5[%c0_16, %c0_17] : memref<1x1xf32, #tpu.memory_space<smem>>
      memref.store %53, %arg5[%c0_16, %c0_17] : memref<1x1xf32, #tpu.memory_space<smem>>
      %c0_18 = arith.constant 0 : index
      %c0_19 = arith.constant 0 : index
      %55 = vector.load %arg9[%c0_18, %c0_19] : memref<1x128xf32, #tpu.memory_space<vmem>>, vector<1x128xf32>
      %56 = vector.shape_cast %55 : vector<1x128xf32> to vector<1x1x128xf32>
      %cst_20 = arith.constant dense<0.000000e+00> : vector<1xf32>
      %57 = vector.multi_reduction <add>, %56, %cst_20 [1, 2] : vector<1x1x128xf32> to vector<1xf32>
      %58 = vector.shape_cast %57 : vector<1xf32> to vector<1x1x1xf32>
      %59 = vector.extract %58[0, 0, 0] : f32 from vector<1x1x1xf32>
      %60 = arith.mulf %59, %47 : f32
      %c0_21 = arith.constant 0 : index
      %c0_22 = arith.constant 0 : index
      %61 = memref.load %arg6[%c0_21, %c0_22] : memref<1x1xf32, #tpu.memory_space<smem>>
      memref.store %60, %arg6[%c0_21, %c0_22] : memref<1x1xf32, #tpu.memory_space<smem>>
    } else {
    }
    return
  }
  func.func @transform_0(%arg0: i32, %arg1: i32, %arg2: memref<1xi32, #tpu.memory_space<smem>>) -> (i32, i32) {
    %c0_i32 = arith.constant 0 : i32
    %c0_i32_0 = arith.constant 0 : i32
    %c0_i32_1 = arith.constant 0 : i32
    return %c0_i32, %c0_i32_0 : i32, i32
  }
  func.func @transform_1(%arg0: i32, %arg1: i32, %arg2: memref<1xi32, #tpu.memory_space<smem>>) -> (i32, i32) {
    %c5_i32 = arith.constant 5 : i32
    %0 = arith.muli %arg0, %c5_i32 : i32
    %1 = arith.addi %0, %arg1 : i32
    %c0_i32 = arith.constant 0 : i32
    %c0_i32_0 = arith.constant 0 : i32
    return %c0_i32, %1 : i32, i32
  }
  func.func @transform_2(%arg0: i32, %arg1: i32, %arg2: memref<1xi32, #tpu.memory_space<smem>>) -> (i32, i32) {
    %c0_i32 = arith.constant 0 : i32
    %c0_i32_0 = arith.constant 0 : i32
    return %arg0, %c0_i32 : i32, i32
  }
  func.func @transform_3(%arg0: i32, %arg1: i32, %arg2: memref<1xi32, #tpu.memory_space<smem>>) -> (i32, i32) {
    %c0_i32 = arith.constant 0 : i32
    %c0_i32_0 = arith.constant 0 : i32
    return %arg0, %c0_i32 : i32, i32
  }
}

</mosaic_0001>

<llo_original>
// kernel: tpu_custom_call.1
$region0: #{tpu_custom_call.1}
  #allocation0 [shape = 'u32[]', space=smem, size = 0x4, offset = 0x4, fixed_abs, tag = 'smem constant byte address 0x4 - core index']
  #allocation1 [shape = 'u32[72,128]{1,0:T(1,128)}', space=vmem, size = 0x9000, scoped, tag = 'internal scratch']
  #allocation2 [shape = 'f32[16,16]{1,0:T(8,128)}', space=vmem, size = 0x2000, scoped, tag = 'scratch operand']
  #allocation3 [shape = 'f32[1,128]{1,0:T(1,128)}', space=vmem, size = 0x200, scoped, tag = 'scratch operand']
  #allocation4 [shape = 'f32[1,128]{1,0:T(1,128)}', space=vmem, size = 0x200, scoped, tag = 'scratch operand']
  #allocation5 [shape = 's32[1]{0}', space=sflag, size = 0x4, scoped, tag = 'scoped memory for tpu_custom_call.1']
  #allocation6 [shape = 's32[1]{0:T(128)S(6)}', space=smem, size = 0x200, scoped, tag = 'prefetched SMEM operand 0']
  %s0 = inlined_call_operand.<no memory space> [shape: s32[1], index: 0, kind: input, shape index: {}]
  %s1 = inlined_call_operand.hbm [shape: f32[16,32], index: 1, kind: input, shape index: {}]
  %s2 = inlined_call_operand.hbm [shape: s32[3,640], index: 2, kind: input, shape index: {}]
  %s3 = inlined_call_operand.hbm [shape: f32[1,1], index: 3, kind: output, shape index: {0}]
  %s4 = inlined_call_operand.hbm [shape: f32[1,1], index: 4, kind: output, shape index: {1}]
  %5 = xla_tuple %s3, %s4
  %s6 = sld [smem:[#allocation0]]
  $region73: #{tpu_custom_call.1} parent=0
    _
  %s8 = ssub.s32 1, %s6
  %s9 = scalar_select 0, %s8, %s6
  %10 = sst [smem:[#allocation6]] %s0
  $region1: #{tpu_custom_call.1} parent=0
    #allocation7 [shape = 'u8[8192]{0}', space=vmem, size = 0x2000, scoped, tag = 'input window, operand 1, single buffered']
    #allocation8 [shape = 's32[2]{0}', space=sflag, size = 0x8, scoped, tag = 'scoped memory for tpu_custom_call.1']
    #allocation9 [shape = 's32[2]{0}', space=sflag, size = 0x8, scoped, tag = 'scoped memory for tpu_custom_call.1']
    #allocation10 [shape = 'u8[4096]{0}', space=vmem, size = 0x1000, scoped, tag = 'input window, operand 2']
    #allocation11 [shape = 's32[2]{0}', space=sflag, size = 0x8, scoped, tag = 'scoped memory for tpu_custom_call.1']
    #allocation12 [shape = 'u8[512]{0}', space=smem, size = 0x200, scoped, tag = 'output window, operand 0, single buffered']
    #allocation13 [shape = 'u8[512]{0}', space=smem, size = 0x200, scoped, tag = 'output window, operand 1, single buffered']
    #allocation14 [shape = 's32[1]{0}', space=sflag, size = 0x4, scoped, tag = 'scoped memory for tpu_custom_call.1']
    %11 = vsyncpa [#allocation8], 0
    %12 = vsyncpa [#allocation11], 0
    %s13 = scalar_lea.sflag [#allocation11], 1
    %14 = vsyncpa %s13, 0
    %15 = vsyncpa [#allocation9], 0
    %16 = vsyncpa [#allocation14], 0
    loop: start=0, step=1, limit=7
    $region2: #{tpu_custom_call.1} parent=1 // loop_pre_header
      _
    $region3: #{tpu_custom_call.1} parent=1 // loop_header
      %s18 = sphi 0, %s22
      %p19 = scmp.ge.s32.totalorder %s18, 7
      %s25 = sphi 0, %s37
      %s26 = sphi 0, %s33
      %s27 = sphi 0, %s25
      %s28 = sphi 0, %s26
      %s29 = sphi 0, %s27
      %s30 = sphi 0, %s28
      %s38 = sphi 0, %s38
      %s40 = sphi 0, %s38
      %s41 = sphi 0, %s40
      %s55 = sphi 0, %s41
      %s65 = sphi 0, %s67
      %s68 = sphi 0, %s65
      %s69 = sphi 0, %s68
      %s85 = sphi 0, %s69
      %s91 = sphi 0, %s93
      %s94 = sphi 0, %s91
      %s95 = sphi 0, %s94
      %s111 = sphi 0, %s95
      %s117 = sphi 0, %s119
      %s120 = sphi 0, %s117
      %s121 = sphi 0, %s120
      %s137 = sphi 0, %s121
    $region4: #{tpu_custom_call.1} parent=1 // loop_header_branch
      %21 = sbr.rel (%p19) target = $region8
    $region5: #{tpu_custom_call.1} parent=1 // loop_body
      %s23 = ssub.s32 %s18, 1
      %s24 = ssub.s32 %s18, 2
      %s31 = sadd.s32 1, %s26
      %p32 = scmp.ge.s32.totalorder %s31, 5
      %s33 = scalar_select %p32, 0, %s31
      %s34 = sadd.s32 1, %s25
      %s35 = scalar_select %p32, %s34, %s25
      %p36 = scmp.ge.s32.totalorder %s35, 1
      %s37 = scalar_select %p36, 0, %s35
      %s39 = sadd.s32 %s38, 1
      %p42 = scmp.eq.s32.totalorder %s18, 4
      %p43 = scmp.ne.s32.totalorder %s38, %s40
      %p44 = scmp.eq.s32.totalorder %s18, 0
      %p45 = por %p43, %p44
      %p46 = scmp.ne.s32.totalorder %s38, %s40
      %p47 = scmp.eq.s32.totalorder %s23, 4
      %p48 = por %p46, %p47
      %p49 = scmp.ne.s32.totalorder %s40, %s41
      %p50 = scmp.eq.s32.totalorder %s23, 0
      %p51 = por %p49, %p50
      %p52 = scmp.ne.s32.totalorder %s40, %s41
      %p53 = scmp.eq.s32.totalorder %s24, 4
      %p54 = por %p52, %p53
      %p56 = scmp.ne.s32.totalorder %s41, %s55
      %p57 = scmp.eq.s32.totalorder %s24, 0
      %p58 = por %p56, %p57
      %s59 = smul.u32 %s25, 5
      %s60 = sadd.s32 %s59, %s26
      %s61 = smul.u32 %s37, 5
      %s62 = sadd.s32 %s61, %s33
      %s63 = ssub.s32 %s60, %s62
      %p64 = scmp.eq.s32.totalorder %s63, 0
      %s66 = sadd.s32 %s65, 1
      %s67 = scalar_select %p64, %s65, %s66
      %p70 = pneg %p64
      %p71 = scmp.eq.s32.totalorder %s18, 4
      %p72 = por %p70, %p71
      %p73 = scmp.ne.s32.totalorder %s65, %s68
      %p74 = scmp.eq.s32.totalorder %s18, 0
      %p75 = por %p73, %p74
      %p76 = scmp.ne.s32.totalorder %s65, %s68
      %p77 = scmp.eq.s32.totalorder %s23, 4
      %p78 = por %p76, %p77
      %p79 = scmp.ne.s32.totalorder %s68, %s69
      %p80 = scmp.eq.s32.totalorder %s23, 0
      %p81 = por %p79, %p80
      %p82 = scmp.ne.s32.totalorder %s68, %s69
      %p83 = scmp.eq.s32.totalorder %s24, 4
      %p84 = por %p82, %p83
      %p86 = scmp.ne.s32.totalorder %s69, %s85
      %p87 = scmp.eq.s32.totalorder %s24, 0
      %p88 = por %p86, %p87
      %s89 = ssub.s32 %s25, %s37
      %p90 = scmp.eq.s32.totalorder %s89, 0
      %s92 = sadd.s32 %s91, 1
      %s93 = scalar_select %p90, %s91, %s92
      %p96 = pneg %p90
      %p97 = scmp.eq.s32.totalorder %s18, 4
      %p98 = por %p96, %p97
      %p99 = scmp.ne.s32.totalorder %s91, %s94
      %p100 = scmp.eq.s32.totalorder %s18, 0
      %p101 = por %p99, %p100
      %p102 = scmp.ne.s32.totalorder %s91, %s94
      %p103 = scmp.eq.s32.totalorder %s23, 4
      %p104 = por %p102, %p103
      %p105 = scmp.ne.s32.totalorder %s94, %s95
      %p106 = scmp.eq.s32.totalorder %s23, 0
      %p107 = por %p105, %p106
      %p108 = scmp.ne.s32.totalorder %s94, %s95
      %p109 = scmp.eq.s32.totalorder %s24, 4
      %p110 = por %p108, %p109
      %p112 = scmp.ne.s32.totalorder %s95, %s111
      %p113 = scmp.eq.s32.totalorder %s24, 0
      %p114 = por %p112, %p113
      %s115 = ssub.s32 %s25, %s37
      %p116 = scmp.eq.s32.totalorder %s115, 0
      %s118 = sadd.s32 %s117, 1
      %s119 = scalar_select %p116, %s117, %s118
      %p122 = pneg %p116
      %p123 = scmp.eq.s32.totalorder %s18, 4
      %p124 = por %p122, %p123
      %p125 = scmp.ne.s32.totalorder %s117, %s120
      %p126 = scmp.eq.s32.totalorder %s18, 0
      %p127 = por %p125, %p126
      %p128 = scmp.ne.s32.totalorder %s117, %s120
      %p129 = scmp.eq.s32.totalorder %s23, 4
      %p130 = por %p128, %p129
      %p131 = scmp.ne.s32.totalorder %s120, %s121
      %p132 = scmp.eq.s32.totalorder %s23, 0
      %p133 = por %p131, %p132
      %p134 = scmp.ne.s32.totalorder %s120, %s121
      %p135 = scmp.eq.s32.totalorder %s24, 4
      %p136 = por %p134, %p135
      %p138 = scmp.ne.s32.totalorder %s121, %s137
      %p139 = scmp.eq.s32.totalorder %s24, 0
      %p140 = por %p138, %p139
      %p141 = scmp.le.s32.totalorder 1, %s18
      %p142 = scmp.lt.s32.totalorder %s18, 6
      %p143 = pnand %p141, %p142
      %p144 = pneg %p143
      // Predicated region
      $region9: #{tpu_custom_call.1} parent=5 // pred_check
        _
      $region10: #{tpu_custom_call.1} parent=5 // pred_check_branch
        %146 = sbr.rel (%p143) target = $region12
      $region11: #{tpu_custom_call.1} parent=5 // pred_region
        %s147 = ssub.s32 %s18, 1
        // Predicated region
        $region13: #{tpu_custom_call.1} parent=11 // pred_check
          %p148 = pneg %p51
        $region14: #{tpu_custom_call.1} parent=11 // pred_check_branch
          %150 = sbr.rel (%p148) target = $region16
        $region15: #{tpu_custom_call.1} parent=11 // pred_region
          %152 = vsyncadd [#allocation8], 0
          %s153 = sshll.u32 %s1, 4
          %s154 = int_to_ptr.hbm [resolvable:$true] %s153
          %s155 = sshll.u32 [#allocation7], 4
          %s156 = int_to_ptr.vmem [resolvable:$true] %s155
          %161 = dma.hbm_to_vmem [thread:$0]  %s154, 256, %s156, [#allocation8], 128, 128, 8
        $region16: #{tpu_custom_call.1} parent=11 // pred_fallthru
          _
      $region12: #{tpu_custom_call.1} parent=5 // pred_fallthru
        _
      %p162 = scmp.lt.s32.totalorder %s18, 5
      // Predicated region
      $region17: #{tpu_custom_call.1} parent=5 // pred_check
        %p163 = pneg %p162
      $region18: #{tpu_custom_call.1} parent=5 // pred_check_branch
        %165 = sbr.rel (%p163) target = $region20
      $region19: #{tpu_custom_call.1} parent=5 // pred_region
        // Predicated region
        $region21: #{tpu_custom_call.1} parent=19 // pred_check
          %p166 = pneg %p75
        $region22: #{tpu_custom_call.1} parent=19 // pred_check_branch
          %168 = sbr.rel (%p166) target = $region24
        $region23: #{tpu_custom_call.1} parent=19 // pred_region
          %s169 = sand.u32 %s65, 1
          %s170 = scalar_lea.sflag [#allocation11], %s169
          %s171 = sand.u32 %s65, 1
          %s172 = smul.addr %s171, 4
          %s173 = scalar_lea.vmem [#allocation10], %s172
          %s174 = smul.u32 %s25, 5
          %s175 = sadd.s32 %s174, %s26
          %177 = vsyncadd %s170, 0
          %s178 = smul.addr %s175, 4
          %s179 = scalar_lea.hbm %s2, %s178
          %s181 = sshll.u32 %s179, 4
          %s182 = int_to_ptr.hbm [resolvable:$true] %s181
          %s183 = sshll.u32 %s173, 4
          %s184 = int_to_ptr.vmem [resolvable:$true] %s183
          %186 = dma.hbm_to_vmem [thread:$0]  %s182, 64, %s184, %s170
        $region24: #{tpu_custom_call.1} parent=19 // pred_fallthru
          _
      $region20: #{tpu_custom_call.1} parent=5 // pred_fallthru
        _
      %p187 = scmp.le.s32.totalorder 1, %s18
      %p188 = scmp.lt.s32.totalorder %s18, 6
      %p189 = pnand %p187, %p188
      %p190 = pneg %p189
      // Predicated region
      $region25: #{tpu_custom_call.1} parent=5 // pred_check
        _
      $region26: #{tpu_custom_call.1} parent=5 // pred_check_branch
        %192 = sbr.rel (%p189) target = $region28
      $region27: #{tpu_custom_call.1} parent=5 // pred_region
        %s193 = ssub.s32 %s18, 1
        // Predicated region
        $region29: #{tpu_custom_call.1} parent=27 // pred_check
          %p194 = pneg %p51
        $region30: #{tpu_custom_call.1} parent=27 // pred_check_branch
          %196 = sbr.rel (%p194) target = $region32
        $region31: #{tpu_custom_call.1} parent=27 // pred_region
          %198 = dma.done [#allocation8], 256
        $region32: #{tpu_custom_call.1} parent=27 // pred_fallthru
          _
        %s199 = sand.u32 %s68, 1
        %s200 = scalar_lea.sflag [#allocation11], %s199
        %s201 = sand.u32 %s68, 1
        %s202 = smul.addr %s201, 4
        %s203 = scalar_lea.vmem [#allocation10], %s202
        // Predicated region
        $region33: #{tpu_custom_call.1} parent=27 // pred_check
          %p204 = pneg %p81
        $region34: #{tpu_custom_call.1} parent=27 // pred_check_branch
          %206 = sbr.rel (%p204) target = $region36
        $region35: #{tpu_custom_call.1} parent=27 // pred_region
          %208 = dma.done %s200, 64
        $region36: #{tpu_custom_call.1} parent=27 // pred_fallthru
          _
        %p209 = pneg %p51
        %p210 = pneg %p48
        %s211 = sand.u32 %s68, 1
        %s212 = scalar_lea.sflag [#allocation11], %s211
        %s213 = sand.u32 %s68, 1
        %s214 = smul.addr %s213, 4
        %s215 = scalar_lea.vmem [#allocation10], %s214
        %p216 = pneg %p81
        %p217 = pneg %p78
        %p218 = pneg %p107
        %p219 = pneg %p104
        %p220 = pneg %p133
        %p221 = pneg %p130
        %s222 = smul.u32 %s27, 5
        %s223 = sadd.s32 %s222, %s28
        %s224 = smul.u32 %s27, 5
        %s225 = sadd.s32 %s224, %s28
        %p226 = scmp.eq.s32.totalorder %s28, 0
        // Predicated region
        $region37: #{tpu_custom_call.1} parent=27 // pred_check
          %p227 = pneg %p226
        $region38: #{tpu_custom_call.1} parent=27 // pred_check_branch
          %229 = sbr.rel (%p227) target = $region40
        $region39: #{tpu_custom_call.1} parent=27 // pred_region
          %v230 = vld [vmem:[#allocation7] sm:$0xff]
          %v231 = vld [vmem:[#allocation7 + $0x8] sm:$0xff]
          %v232 = vmul.f32 %v230, %v230
          %v233 = vmul.f32 %v231, %v231
          %vm234 = vcmask 261120
          %v235 = vsel %vm234, %v232, 0.0
          %236 = vadd.xlane.f32.xlu0 %v235
          %v237 = vpop.xlane.xlu0 %236
          %v238 = vsel %vm234, %v233, 0.0
          %239 = vadd.xlane.f32.xlu0 %v238
          %v240 = vpop.xlane.xlu0 %239
          %v241 = vrsqrt.pop %v237
          %v242 = vmul.f32 %v241, %v237
          %v243 = vmul.f32 %v242, %v241
          %v244 = vmul.f32 0.5, %v243
          %v245 = vsub.f32 1.5, %v244
          %v246 = vmul.f32 %v241, %v245
          %vm247 = vweird.f32 %v237
          %vm248 = vweird.f32 %v241
          %vm249 = vmor %vm247, %vm248
          %v250 = vsel %vm249, %v241, %v246
          %v251 = vrsqrt.pop %v240
          %v252 = vmul.f32 %v251, %v240
          %v253 = vmul.f32 %v252, %v251
          %v254 = vmul.f32 0.5, %v253
          %v255 = vsub.f32 1.5, %v254
          %v256 = vmul.f32 %v251, %v255
          %vm257 = vweird.f32 %v240
          %vm258 = vweird.f32 %v251
          %vm259 = vmor %vm257, %vm258
          %v260 = vsel %vm259, %v251, %v256
          %v261 = vmin.f32 %v250, 1e+12
          %v262 = vmin.f32 %v260, 1e+12
          %v263 = vmul.f32 %v230, %v261
          %v264 = vmul.f32 %v231, %v262
          %v266 = vsel %vm234, %v263, 0
          %v269 = vsel %vm234, %v264, 0
          %271 = vmatpush.xpose.msra.mxu0 0.0
          %272 = vmatpush.xpose.msra.mxu0 0.0
          %273 = vmatpush.xpose.msra.mxu0 0.0
          %274 = vmatpush.xpose.msra.mxu0 0.0
          %275 = vmatpush.xpose.msra.mxu0 0.0
          %276 = vmatpush.xpose.msra.mxu0 0.0
          %277 = vmatpush.xpose.msra.mxu0 0.0
          %278 = vmatpush.xpose.msra.mxu0 0.0
          %279 = vmatpush.xpose.msra.mxu0 0.0
          %280 = vmatpush.xpose.msra.mxu0 0.0
          %281 = vmatpush.xpose.msra.mxu0 0.0
          %282 = vmatpush.xpose.msra.mxu0 0.0
          %283 = vmatpush.xpose.msra.mxu0 0.0
          %284 = vmatpush.xpose.msra.mxu0 0.0
          %285 = vmatpush.xpose.msra.mxu0 %v269
          %286 = vmatpush.xpose.msra.mxu0 %v266
          %287 = vmatmul.f32.gmra.mxu0 %v266
          %v288 = vpop.f32.mrf.mxu0
          %v289 = vadd.f32 0.0, %v288
          %290 = vmatmul.f32.gmra.mxu0 %v269
          %v291 = vpop.f32.mrf.mxu0
          %v292 = vadd.f32 0.0, %v291
          %293 = vdwg.mxu0
          %v294 = vmul.f32 %v263, %v263
          %v295 = vmul.f32 %v264, %v264
          %v296 = vsel %vm234, %v294, 0.0
          %297 = vadd.xlane.f32.xlu0 %v296
          %v298 = vpop.xlane.xlu0 %297
          %v299 = vsel %vm234, %v295, 0.0
          %300 = vadd.xlane.f32.xlu0 %v299
          %v301 = vpop.xlane.xlu0 %300
          %v302 = vmul.f32 %v289, 2.0
          %v303 = vmul.f32 %v292, 2.0
          %v304 = vsub.f32 %v302, %v298
          %v305 = vsub.f32 %v303, %v301
          %vm306 = vcmask 130048
          %307 = vst.msk [vmem:[#allocation2] sm:$0xff] %vm306, %v304
          %308 = vst.msk [vmem:[#allocation2 + $0x8] sm:$0xff] %vm306, %v305
          %309 = vst [vmem:[#allocation3] sm:$0x1] 0.0
          %310 = vst [vmem:[#allocation4] sm:$0x1] 0.0
        $region40: #{tpu_custom_call.1} parent=27 // pred_fallthru
          _
        %v311 = vld [vmem:[%s203] sm:$0x7]
        %v312 = vlaneseq
        %v313 = vshrl.u32 %v312, 7
        %v314 = vadd.s32 %v313, 8
        %v315 = vperm.slane %v311, 0
        %vm316 = vcmp.eq.s32.totalorder %v313, %v315
        %vm317 = vcmp.eq.s32.totalorder %v314, %v315
        %v318 = vsel %vm316, 1, 0
        %v319 = vsel %vm317, 1, 0
        %v320 = vcvt.s32.f32 %v318
        %v321 = vcvt.s32.f32 %v319
        %v322 = vperm.slane %v311, 2
        %vm323 = vcmp.eq.s32.totalorder %v313, %v322
        %vm324 = vcmp.eq.s32.totalorder %v314, %v322
        %v325 = vsel %vm323, 1, 0
        %v326 = vsel %vm324, 1, 0
        %v327 = vcvt.s32.f32 %v325
        %v328 = vcvt.s32.f32 %v326
        %v329 = vperm.slane %v311, 1
        %vm330 = vcmp.eq.s32.totalorder %v313, %v329
        %vm331 = vcmp.eq.s32.totalorder %v314, %v329
        %v332 = vsel %vm330, 1, 0
        %v333 = vsel %vm331, 1, 0
        %v334 = vcvt.s32.f32 %v332
        %v335 = vcvt.s32.f32 %v333
        %v336 = vsub.f32 %v327, %v334
        %v337 = vsub.f32 %v328, %v335
        %v338 = vld [vmem:[#allocation2] sm:$0xff]
        %v339 = vld [vmem:[#allocation2 + $0x8] sm:$0xff]
        %vm340 = vcmask 130048
        %v342 = vsel %vm340, %v338, 0
        %v345 = vsel %vm340, %v339, 0
        %347 = vmatpush.msra.mxu0 0.0
        %348 = vmatpush.msra.mxu0 0.0
        %349 = vmatpush.msra.mxu0 0.0
        %350 = vmatpush.msra.mxu0 0.0
        %351 = vmatpush.msra.mxu0 0.0
        %352 = vmatpush.msra.mxu0 0.0
        %353 = vmatpush.msra.mxu0 0.0
        %354 = vmatpush.msra.mxu0 0.0
        %355 = vmatpush.msra.mxu0 0.0
        %356 = vmatpush.msra.mxu0 0.0
        %357 = vmatpush.msra.mxu0 0.0
        %358 = vmatpush.msra.mxu0 0.0
        %359 = vmatpush.msra.mxu0 0.0
        %360 = vmatpush.msra.mxu0 0.0
        %361 = vmatpush.msra.mxu0 %v321
        %362 = vmatpush.msra.mxu0 %v320
        %363 = vmatmul.f32.gmra.mxu0 %v342
        %v364 = vpop.f32.mrf.mxu0
        %v365 = vadd.f32 0.0, %v364
        %366 = vmatmul.f32.gmra.mxu0 %v345
        %v367 = vpop.f32.mrf.mxu0
        %v368 = vadd.f32 0.0, %v367
        %369 = vdwg.mxu0
        %v370 = vmul.f32 %v336, %v365
        %v371 = vmul.f32 %v337, %v368
        %v372 = vadd.f32 %v370, %v371
        %v373 = vrot.slane %v372, 4
        %v374 = vadd.f32 %v372, %v373
        %v375 = vrot.slane %v374, 2
        %v376 = vadd.f32 %v374, %v375
        %v377 = vrot.slane %v376, 1
        %v378 = vadd.f32 %v376, %v377
        %v379 = vadd.f32 %v378, 1.0
        %v380 = vmax.f32 %v379, 0.0
        %v381 = vsub.f32 0.0, %v378
        %s382 = sld [smem:[#allocation6]]
        %s383 = sadd.s32 %s225, 1
        %s384 = smul.u32 %s383, 128
        %p385 = scmp.gt.s32.totalorder %s384, %s382
        %p386 = scmp.le.s32.totalorder %s384, %s382
        // Predicated region
        $region41: #{tpu_custom_call.1} parent=27 // pred_check
          %p387 = pneg %p386
        $region42: #{tpu_custom_call.1} parent=27 // pred_check_branch
          %389 = sbr.rel (%p387) target = $region44
        $region43: #{tpu_custom_call.1} parent=27 // pred_region
          %v390 = vld [vmem:[#allocation3] sm:$0x1]
          %v391 = vadd.f32 %v390, %v380
          %392 = vst [vmem:[#allocation3] sm:$0x1] %v391
          %v393 = vld [vmem:[#allocation4] sm:$0x1]
          %v394 = vadd.f32 %v393, %v381
          %395 = vst [vmem:[#allocation4] sm:$0x1] %v394
        $region44: #{tpu_custom_call.1} parent=27 // pred_fallthru
          _
        // Predicated region
        $region45: #{tpu_custom_call.1} parent=27 // pred_check
          %p396 = pneg %p385
        $region46: #{tpu_custom_call.1} parent=27 // pred_check_branch
          %398 = sbr.rel (%p396) target = $region48
        $region47: #{tpu_custom_call.1} parent=27 // pred_region
          %v399 = vlaneseq
          %v400 = vand.u32 %v399, 127
          %s401 = smul.u32 %s225, 128
          %v402 = vstv %s401
          %v403 = vadd.s32 %v400, %v402
          %v404 = vstv %s382
          %vm405 = vcmp.lt.s32.totalorder %v403, %v404
          %v406 = vld [vmem:[#allocation3] sm:$0x1]
          %v407 = vsel %vm405, %v380, 0.0
          %v408 = vadd.f32 %v406, %v407
          %409 = vst [vmem:[#allocation3] sm:$0x1] %v408
          %v410 = vld [vmem:[#allocation4] sm:$0x1]
          %v411 = vsel %vm405, %v381, 0.0
          %v412 = vadd.f32 %v410, %v411
          %413 = vst [vmem:[#allocation4] sm:$0x1] %v412
        $region48: #{tpu_custom_call.1} parent=27 // pred_fallthru
          _
        %p414 = scmp.eq.s32.totalorder %s28, 4
        // Predicated region
        $region49: #{tpu_custom_call.1} parent=27 // pred_check
          %p415 = pneg %p414
        $region50: #{tpu_custom_call.1} parent=27 // pred_check_branch
          %417 = sbr.rel (%p415) target = $region52
        $region51: #{tpu_custom_call.1} parent=27 // pred_region
          %s418 = scvt.s32.f32 %s382
          %v419 = vstv %s418
          %v420 = vrcp.pop %v419
          %v421 = vmul.f32 %v419, %v420
          %v422 = vsub.f32 1.0, %v421
          %v423 = vmul.f32 %v420, %v422
          %v424 = vadd.f32 %v420, %v423
          %vm425 = vweird.f32 %v419
          %vm426 = vweird.f32 %v420
          %vm427 = vmor %vm425, %vm426
          %v428 = vsel %vm427, %v420, %v424
          %v429 = vand.u32 2147483647, %v419
          %vm430 = vcmp.eq.f32.partialorder %v429, 8.507059e+37
          %v431 = vand.u32 %v419, 2147483648
          %v432 = vor.u32 1.1754944e-38, %v431
          %v433 = vsel %vm430, %v432, %v428
          %s434 = vtos %v433
          %v435 = vld [vmem:[#allocation3] sm:$0x1]
          %vm436 = vcmask 1040384
          %v437 = vsel %vm436, %v435, 0.0
          %438 = vadd.xlane.f32.xlu0 %v437
          %v439 = vpop.xlane.xlu0 %438
          %v440 = vrot.slane %v439, 4
          %v441 = vadd.f32 %v439, %v440
          %v442 = vrot.slane %v441, 2
          %v443 = vadd.f32 %v441, %v442
          %v444 = vrot.slane %v443, 1
          %v445 = vadd.f32 %v443, %v444
          %s446 = vtos %v445
          %s447 = smul.f32 %s446, %s434
          %s448 = scalar_lea.smem [#allocation12], 0
          %449 = sst [smem:[%s448]] %s447
          %v450 = vld [vmem:[#allocation4] sm:$0x1]
          %v451 = vsel %vm436, %v450, 0.0
          %452 = vadd.xlane.f32.xlu0 %v451
          %v453 = vpop.xlane.xlu0 %452
          %v454 = vrot.slane %v453, 4
          %v455 = vadd.f32 %v453, %v454
          %v456 = vrot.slane %v455, 2
          %v457 = vadd.f32 %v455, %v456
          %v458 = vrot.slane %v457, 1
          %v459 = vadd.f32 %v457, %v458
          %s460 = vtos %v459
          %s461 = smul.f32 %s460, %s434
          %s462 = scalar_lea.smem [#allocation13], 0
          %463 = sst [smem:[%s462]] %s461
        $region52: #{tpu_custom_call.1} parent=27 // pred_fallthru
          _
        // Predicated region
        $region53: #{tpu_custom_call.1} parent=27 // pred_check
          %p464 = pneg %p104
        $region54: #{tpu_custom_call.1} parent=27 // pred_check_branch
          %466 = sbr.rel (%p464) target = $region56
        $region55: #{tpu_custom_call.1} parent=27 // pred_region
          %468 = vsyncadd [#allocation9], 0
          %s469 = scalar_lea.hbm %s3, %s27
          %s471 = sshll.u32 %s469, 4
          %s472 = int_to_ptr.hbm [resolvable:$true] %s471
          %474 = dma.smem_to_hbm [#allocation12], 16, %s472, [#allocation9]
        $region56: #{tpu_custom_call.1} parent=27 // pred_fallthru
          _
        // Predicated region
        $region57: #{tpu_custom_call.1} parent=27 // pred_check
          %p475 = pneg %p130
        $region58: #{tpu_custom_call.1} parent=27 // pred_check_branch
          %477 = sbr.rel (%p475) target = $region60
        $region59: #{tpu_custom_call.1} parent=27 // pred_region
          %479 = vsyncadd [#allocation14], 0
          %s480 = scalar_lea.hbm %s4, %s27
          %s482 = sshll.u32 %s480, 4
          %s483 = int_to_ptr.hbm [resolvable:$true] %s482
          %485 = dma.smem_to_hbm [#allocation13], 16, %s483, [#allocation14]
        $region60: #{tpu_custom_call.1} parent=27 // pred_fallthru
          _
        // Predicated region
        $region61: #{tpu_custom_call.1} parent=27 // pred_check
          %p486 = pneg %p104
        $region62: #{tpu_custom_call.1} parent=27 // pred_check_branch
          %488 = sbr.rel (%p486) target = $region64
        $region63: #{tpu_custom_call.1} parent=27 // pred_region
          %490 = dma.done [#allocation9], 16
        $region64: #{tpu_custom_call.1} parent=27 // pred_fallthru
          _
        // Predicated region
        $region65: #{tpu_custom_call.1} parent=27 // pred_check
          %p491 = pneg %p130
        $region66: #{tpu_custom_call.1} parent=27 // pred_check_branch
          %493 = sbr.rel (%p491) target = $region68
        $region67: #{tpu_custom_call.1} parent=27 // pred_region
          %495 = dma.done [#allocation14], 16
        $region68: #{tpu_custom_call.1} parent=27 // pred_fallthru
          _
        %496 = sfence
      $region28: #{tpu_custom_call.1} parent=5 // pred_fallthru
        _
      %p497 = scmp.le.s32.totalorder 2, %s18
      // Predicated region
      $region69: #{tpu_custom_call.1} parent=5 // pred_check
        %p498 = pneg %p497
      $region70: #{tpu_custom_call.1} parent=5 // pred_check_branch
        %500 = sbr.rel (%p498) target = $region72
      $region71: #{tpu_custom_call.1} parent=5 // pred_region
        %s501 = ssub.s32 %s18, 2
      $region72: #{tpu_custom_call.1} parent=5 // pred_fallthru
        _
    $region6: #{tpu_custom_call.1} parent=1 // loop_footer
      %s22 = sadd.s32 1, %s18
    $region7: #{tpu_custom_call.1} parent=1 // loop_footer_branch
      %17 = sbr.rel target = $region3
    $region8: #{tpu_custom_call.1} parent=1 // loop_exit
      _
    %502 = vsyncpa [#allocation8], 1
    %s503 = scalar_lea.sflag [#allocation8], 1
    %504 = vsyncpa %s503, 1
    %505 = vsyncpa [#allocation11], 1
    %s506 = scalar_lea.sflag [#allocation11], 1
    %507 = vsyncpa %s506, 1
    %508 = vsyncpa [#allocation9], 1
    %s509 = scalar_lea.sflag [#allocation9], 1
    %510 = vsyncpa %s509, 1
    %511 = vsyncpa [#allocation14], 1

</llo_original>
